<compile_context>
chip_gen: v7x
topology: tpu7x:2x2x1
jax: 0.10.0
libtpu: 0.0.40
codegen_flags: <defaults>
</compile_context>

<pallas_src>
import jax
import jax.numpy as jnp
import numpy as np
from jax.experimental import pallas as pl
from jax.experimental.pallas import tpu as pltpu

# Above the 32 MiB scoped default, below v7x's 64 MiB physical VMEM (with headroom);
# also safe on v5e / v6e (128 MiB).
_VMEM_LIMIT_BYTES = 48 * 1024 * 1024


# ----------------------------- gating kernel -------------------------------
def _gate_kernel(x_ref, wgn_ref, bgn_ref, noise_ref, h_ref):
    # Single fused MXU pass for both projections:
    #   [G | N] = x @ [Wg^T | Wn^T] + [bg | bn]     (bf16 operands, f32 accumulation)
    gn = jnp.dot(x_ref[...], wgn_ref[...],
                 preferred_element_type=jnp.float32) + bgn_ref[...]
    e = noise_ref.shape[-1]
    g = gn[:, :e]
    n = gn[:, e:]
    # numerically-stable softplus in f32 (EUP/VPU)
    sp = jnp.maximum(n, 0.0) + jnp.log1p(jnp.exp(-jnp.abs(n)))
    h_ref[...] = g + noise_ref[...] * sp


def noisy_gate_logits(x, w_gn, b_gn, noise, *, tm=None):
    B, D = x.shape
    E2 = w_gn.shape[1]
    E = E2 // 2
    if tm is None:
        tm = B if B <= 512 else 512   # grow batch tile toward the VMEM budget
    assert B % tm == 0
    return pl.pallas_call(
        _gate_kernel,
        out_shape=jax.ShapeDtypeStruct((B, E), jnp.float32),
        grid_spec=pl.GridSpec(
            grid=(B // tm,),
            in_specs=[
                pl.BlockSpec((tm, D), lambda bt: (bt, 0)),
                pl.BlockSpec((D, E2), lambda bt: (0, 0)),
                pl.BlockSpec((1, E2), lambda bt: (0, 0)),
                pl.BlockSpec((tm, E), lambda bt: (bt, 0)),
            ],
            out_specs=pl.BlockSpec((tm, E), lambda bt: (bt, 0)),
        ),
        compiler_params=pltpu.CompilerParams(
            dimension_semantics=("parallel",),
            vmem_limit_bytes=_VMEM_LIMIT_BYTES,
        ),
    )(x, w_gn, b_gn, noise)


# --------------------------- expert + combine kernel ------------------------
def _moe_expert_kernel(act_ref, nact_ref, x_ref, w1_ref, b1_ref, w2_ref, b2_ref,
                       c_ref, o_ref, acc_ref):
    del act_ref  # only consumed by the index_maps (data-dependent expert selection)
    e = pl.program_id(1)

    @pl.when(e == 0)
    def _():
        acc_ref[...] = jnp.zeros_like(acc_ref)

    # Experts with no routed tokens were compacted out by the wrapper; the tail of the
    # expert axis is padding (repeated block index -> weight DMA already elided).
    # Skip both MXU passes for those steps.
    @pl.when(e < nact_ref[0])
    def _():
        h = jnp.dot(x_ref[...], w1_ref[...],
                    preferred_element_type=jnp.float32) + b1_ref[...]
        h = jnp.maximum(h, 0.0)                                        # ReLU in f32
        y = jnp.dot(h.astype(w2_ref.dtype), w2_ref[...],
                    preferred_element_type=jnp.float32) + b2_ref[...]
        # c_ref is (tm, 1): per-sample gate weight for this expert (0 if not routed)
        acc_ref[...] += c_ref[...] * y

    @pl.when(e == pl.num_programs(1) - 1)
    def _():
        o_ref[...] = acc_ref[...].astype(o_ref.dtype)


def moe_experts_combine(active_ids, num_active, x, w1_t, b1, w2_t, b2, combine,
                        *, tm=None):
    B, D = x.shape
    E, _, H = w1_t.shape
    if tm is None:
        tm = B if B <= 256 else 256   # batch tile; grows toward the VMEM budget at large B
    assert B % tm == 0
    # NOTE: at production D/H the contraction dims should additionally be K-tiled
    # (extra grid axes); at these shapes the full (D,H)/(H,D) blocks fit VMEM easily.
    return pl.pallas_call(
        _moe_expert_kernel,
        out_shape=jax.ShapeDtypeStruct((B, D), jnp.float32),
        grid_spec=pltpu.PrefetchScalarGridSpec(
            num_scalar_prefetch=2,
            grid=(B // tm, E),   # batch tiles (parallel) x experts (reduction/arbitrary)
            in_specs=[
                pl.BlockSpec((tm, D), lambda bt, e, act, nact: (bt, 0)),
                pl.BlockSpec((None, D, H), lambda bt, e, act, nact: (act[e], 0, 0)),
                pl.BlockSpec((None, 1, H), lambda bt, e, act, nact: (act[e], 0, 0)),
                pl.BlockSpec((None, H, D), lambda bt, e, act, nact: (act[e], 0, 0)),
                pl.BlockSpec((None, 1, D), lambda bt, e, act, nact: (act[e], 0, 0)),
                pl.BlockSpec((None, tm, 1), lambda bt, e, act, nact: (act[e], bt, 0)),
            ],
            out_specs=pl.BlockSpec((tm, D), lambda bt, e, act, nact: (bt, 0)),
            scratch_shapes=[pltpu.VMEM((tm, D), jnp.float32)],
        ),
        compiler_params=pltpu.CompilerParams(
            dimension_semantics=("parallel", "arbitrary"),
            vmem_limit_bytes=_VMEM_LIMIT_BYTES,
        ),
    )(active_ids, num_active, x, w1_t, b1, w2_t, b2, combine)


# ------------------------------- MOE forward --------------------------------
def moe_forward(params, x, noise, k):
    E = noise.shape[-1]
    x_bf = x.astype(params["w_gn"].dtype)

    # gating: H = Wg(x) + noise * softplus(Wn(x))   (one fused Pallas matmul)
    h = noisy_gate_logits(x_bf, params["w_gn"], params["b_gn"], noise)

    # TODO(synk): small-k top-k + softmax routing has no clean Pallas TPU primitive;
    # computed in JAX glue on the tiny (B, E) logits.
    topk_vals, topk_inds = jax.lax.top_k(h, k)
    gates = jax.nn.softmax(topk_vals, axis=-1)

    # dense combine weights C[e, i] = sum_j gates[i, j] * [inds[i, j] == e]
    onehot = jax.nn.one_hot(topk_inds, E, dtype=jnp.float32)           # (B, k, E)
    combine = jnp.einsum("bk,bke->eb", gates, onehot)[..., None]        # (E, B, 1)

    # Routing metadata for scalar prefetch: active expert ids compacted to the front,
    # tail repeats the last active id (so padded steps re-use the same weight block
    # and their DMAs are skipped).
    routed = jnp.sum(onehot, axis=(0, 1)) > 0                           # (E,)
    num_active = jnp.sum(routed).astype(jnp.int32)
    sort_key = jnp.where(routed, 0, E) + jnp.arange(E)                  # unique keys
    order = jnp.argsort(sort_key)                                       # actives first
    active_ids = order[jnp.minimum(jnp.arange(E), num_active - 1)].astype(jnp.int32)

    ret = moe_experts_combine(active_ids, num_active[None], x_bf,
                              params["w1_t"], params["b1"],
                              params["w2_t"], params["b2"], combine)
    return ret, gates, topk_inds


# ---------------------------- parameter init ---------------------------------
def _linear_init(key, fan_in, fan_out):
    # mimic PyTorch nn.Linear default: U(-1/sqrt(fan_in), 1/sqrt(fan_in))
    kw, kb = jax.random.split(key)
    bound = 1.0 / np.sqrt(fan_in)
    w = jax.random.uniform(kw, (fan_out, fan_in), jnp.float32, -bound, bound)
    b = jax.random.uniform(kb, (fan_out,), jnp.float32, -bound, bound)
    return w, b


def init_moe_params(key, num_experts, dim, hid, compute_dtype=jnp.bfloat16):
    keys = jax.random.split(key, 2 + num_experts)
    wg, bg = _linear_init(keys[0], dim, num_experts)
    wn, bn = _linear_init(keys[1], dim, num_experts)
    w1s, b1s, w2s, b2s = [], [], [], []
    for e in range(num_experts):
        k1, k2 = jax.random.split(keys[2 + e])
        w1, b1 = _linear_init(k1, dim, hid)
        w2, b2 = _linear_init(k2, hid, dim)
        w1s.append(w1); b1s.append(b1); w2s.append(w2); b2s.append(b2)
    return {
        # fused gate/noise projection: (dim, 2E), one MXU pass in the gate kernel
        "w_gn": jnp.concatenate([wg.T, wn.T], axis=1).astype(compute_dtype),  # (D, 2E)
        "b_gn": jnp.concatenate([bg, bn])[None, :].astype(jnp.float32),       # (1, 2E)
        # expert weights pre-transposed to (in, out), stacked over experts;
        # matmul operands bf16, biases / accumulation f32
        "w1_t": jnp.stack(w1s).transpose(0, 2, 1).astype(compute_dtype),      # (E, D, H)
        "b1": jnp.stack(b1s)[:, None, :].astype(jnp.float32),                 # (E, 1, H)
        "w2_t": jnp.stack(w2s).transpose(0, 2, 1).astype(compute_dtype),      # (E, H, D)
        "b2": jnp.stack(b2s)[:, None, :].astype(jnp.float32),                 # (E, 1, D)
    }


# ------------------------------ reference -----------------------------------
def moe_reference(params, x, noise, k):
    """Pure-JAX replica of MOE.vanillaExperts using the same bf16-operand /
    f32-accumulation precision as the kernels."""
    x_bf = x.astype(params["w_gn"].dtype)
    E = noise.shape[-1]
    gn = (jnp.dot(x_bf, params["w_gn"], preferred_element_type=jnp.float32)
          + params["b_gn"])
    h = gn[:, :E] + noise * jax.nn.softplus(gn[:, E:])
    topk_vals, topk_inds = jax.lax.top_k(h, k)
    gates = jax.nn.softmax(topk_vals, axis=-1)
    hidden = jnp.maximum(
        jnp.einsum("bd,edh->ebh", x_bf, params["w1_t"],
                   preferred_element_type=jnp.float32) + params["b1"], 0.0)
    y = jnp.einsum("ebh,ehd->ebd", hidden.astype(params["w2_t"].dtype),
                   params["w2_t"], preferred_element_type=jnp.float32) + params["b2"]
    B = x.shape[0]
    out = jnp.zeros((B, x.shape[1]), jnp.float32)
    for j in range(k):
        out = out + gates[:, j:j + 1] * y[topk_inds[:, j], jnp.arange(B)]
    return out


if __name__ == "__main__":
    num_experts, k, dim, hid, batch = 8, 2, 32, 64, 8

    key = jax.random.PRNGKey(0)
    kp, kx, kn = jax.random.split(key, 3)
    params = init_moe_params(kp, num_experts, dim, hid)
    x = jax.random.normal(kx, (batch, dim), jnp.float32)
    # noise = torch.randn(*Wg(x).size()) in the reference -> shape (batch, E),
    # generated deterministically here.
    noise = jax.random.normal(kn, (batch, num_experts), jnp.float32)

    ret, gates, inds = moe_forward(params, x, noise, k)
    ret = jax.block_until_ready(ret)

    ref = moe_reference(params, x, noise, k)
    np.testing.assert_allclose(np.asarray(ret), np.asarray(ref), rtol=1e-3, atol=1e-3)

    print("KERNEL_OK")
</pallas_src>

<mosaic_0001>
module attributes {stable_mosaic.version = 11 : i64} {
  func.func @_gate_kernel(%arg0: i32, %arg1: memref<8x32xbf16, #tpu.memory_space<vmem>>, %arg2: memref<32x16xbf16, #tpu.memory_space<vmem>>, %arg3: memref<1x16xf32, #tpu.memory_space<vmem>>, %arg4: memref<8x8xf32, #tpu.memory_space<vmem>>, %arg5: memref<8x8xf32, #tpu.memory_space<vmem>>) attributes {dimension_semantics = [#tpu.dimension_semantics<parallel>], iteration_bounds = array<i64: 1>, scalar_prefetch = 0 : i64, scratch_operands = 0 : i64, tpu.core_type = #tpu.core_type<tc>, window_params = [{transform_indices = @transform_0, window_bounds = array<i64: 8, 32>}, {pipeline_mode = #tpu.pipeline_mode<synchronous>, transform_indices = @transform_1, window_bounds = array<i64: 32, 16>}, {pipeline_mode = #tpu.pipeline_mode<synchronous>, transform_indices = @transform_2, window_bounds = array<i64: 1, 16>}, {transform_indices = @transform_3, window_bounds = array<i64: 8, 8>}, {transform_indices = @transform_4, window_bounds = array<i64: 8, 8>}]} {
    %c0 = arith.constant 0 : index
    %c0_0 = arith.constant 0 : index
    %0 = vector.load %arg1[%c0, %c0_0] : memref<8x32xbf16, #tpu.memory_space<vmem>>, vector<8x32xbf16>
    %c0_1 = arith.constant 0 : index
    %c0_2 = arith.constant 0 : index
    %1 = vector.load %arg2[%c0_1, %c0_2] : memref<32x16xbf16, #tpu.memory_space<vmem>>, vector<32x16xbf16>
    %cst = arith.constant dense<0.000000e+00> : vector<8x16xf32>
    %2 = tpu.matmul %0, %1, %cst {dimension_numbers = #tpu.dot_dimension_numbers<[1], [0], [0], [1], [0, 0, 1, 1], [], []>} : vector<8x32xbf16>, vector<32x16xbf16>, vector<8x16xf32> -> vector<8x16xf32>
    %c0_3 = arith.constant 0 : index
    %c0_4 = arith.constant 0 : index
    %3 = vector.load %arg3[%c0_3, %c0_4] : memref<1x16xf32, #tpu.memory_space<vmem>>, vector<1x16xf32>
    %4 = vector.broadcast %3 : vector<1x16xf32> to vector<8x16xf32>
    %5 = arith.addf %2, %4 : vector<8x16xf32>
    %6 = vector.extract_strided_slice %5 {offsets = [0, 0], sizes = [8, 8], strides = [1, 1]} : vector<8x16xf32> to vector<8x8xf32>
    %7 = vector.extract_strided_slice %5 {offsets = [0, 8], sizes = [8, 8], strides = [1, 1]} : vector<8x16xf32> to vector<8x8xf32>
    %cst_5 = arith.constant 0.000000e+00 : f32
    %8 = vector.broadcast %cst_5 : f32 to vector<8x8xf32>
    %9 = arith.maximumf %7, %8 : vector<8x8xf32>
    %10 = math.absf %7 : vector<8x8xf32>
    %cst_6 = arith.constant 0.000000e+00 : f32
    %11 = vector.broadcast %cst_6 : f32 to vector<8x8xf32>
    %12 = arith.subf %11, %10 : vector<8x8xf32>
    %13 = math.exp %12 : vector<8x8xf32>
    %14 = math.log1p %13 : vector<8x8xf32>
    %15 = arith.addf %9, %14 : vector<8x8xf32>
    %c0_7 = arith.constant 0 : index
    %c0_8 = arith.constant 0 : index
    %16 = vector.load %arg4[%c0_7, %c0_8] : memref<8x8xf32, #tpu.memory_space<vmem>>, vector<8x8xf32>
    %17 = arith.mulf %16, %15 : vector<8x8xf32>
    %18 = arith.addf %6, %17 : vector<8x8xf32>
    %c0_9 = arith.constant 0 : index
    %c0_10 = arith.constant 0 : index
    %19 = vector.load %arg5[%c0_9, %c0_10] : memref<8x8xf32, #tpu.memory_space<vmem>>, vector<8x8xf32>
    tpu.vector_store %arg5[%c0_9, %c0_10], %18 {strides = array<i32>} : memref<8x8xf32, #tpu.memory_space<vmem>>, vector<8x8xf32>,
    return
  }
  func.func @transform_0(%arg0: i32) -> (i32, i32) {
    %c0_i32 = arith.constant 0 : i32
    %c0_i32_0 = arith.constant 0 : i32
    return %arg0, %c0_i32 : i32, i32
  }
  func.func @transform_1(%arg0: i32) -> (i32, i32) {
    %c0_i32 = arith.constant 0 : i32
    %c0_i32_0 = arith.constant 0 : i32
    %c0_i32_1 = arith.constant 0 : i32
    return %c0_i32, %c0_i32_0 : i32, i32
  }
  func.func @transform_2(%arg0: i32) -> (i32, i32) {
    %c0_i32 = arith.constant 0 : i32
    %c0_i32_0 = arith.constant 0 : i32
    %c0_i32_1 = arith.constant 0 : i32
    return %c0_i32, %c0_i32_0 : i32, i32
  }
  func.func @transform_3(%arg0: i32) -> (i32, i32) {
    %c0_i32 = arith.constant 0 : i32
    %c0_i32_0 = arith.constant 0 : i32
    return %arg0, %c0_i32 : i32, i32
  }
  func.func @transform_4(%arg0: i32) -> (i32, i32) {
    %c0_i32 = arith.constant 0 : i32
    %c0_i32_0 = arith.constant 0 : i32
    return %arg0, %c0_i32 : i32, i32
  }
}

</mosaic_0001>

<llo_original>
// kernel: tpu_custom_call.1
$region0: #{tpu_custom_call.1}
  #allocation0 [shape = 'u32[]', space=smem, size = 0x4, offset = 0x4, fixed_abs, tag = 'smem constant byte address 0x4 - core index']
  #allocation1 [shape = 'u32[144,128]{1,0:T(1,128)}', space=vmem, size = 0x12000, scoped, tag = 'internal scratch']
  %s0 = inlined_call_operand.vmem [shape: bf16[8,32], index: 0, kind: input, shape index: {}]
  %s1 = inlined_call_operand.vmem [shape: bf16[32,16], index: 1, kind: input, shape index: {}]
  %s2 = inlined_call_operand.vmem [shape: f32[1,16], index: 2, kind: input, shape index: {}]
  %s3 = inlined_call_operand.vmem [shape: f32[8,8], index: 3, kind: input, shape index: {}]
  %s4 = inlined_call_operand.hbm [shape: f32[8,8], index: 4, kind: output, shape index: {}]
  %s5 = sld [smem:[#allocation0]]
  $region26: #{tpu_custom_call.1} parent=0
    _
  %s7 = ssub.s32 1, %s5
  %s8 = scalar_select 0, %s7, %s5
  $region1: #{tpu_custom_call.1} parent=0
    #allocation2 [shape = 'u8[4096]{0}', space=vmem, size = 0x1000, scoped, tag = 'output window, operand 0, single buffered']
    #allocation3 [shape = 's32[1]{0}', space=sflag, size = 0x4, scoped, tag = 'scoped memory for tpu_custom_call.1']
    %9 = vsyncpa [#allocation3], 0
    // Predicated region
    $region2: #{tpu_custom_call.1} parent=1 // pred_check
      _
    $region3: #{tpu_custom_call.1} parent=1 // pred_check_branch
      %11 = sbr.rel (0) target = $region5
    $region4: #{tpu_custom_call.1} parent=1 // pred_region
      _
    $region5: #{tpu_custom_call.1} parent=1 // pred_fallthru
      _
    // Predicated region
    $region6: #{tpu_custom_call.1} parent=1 // pred_check
      _
    $region7: #{tpu_custom_call.1} parent=1 // pred_check_branch
      %13 = sbr.rel (0) target = $region9
    $region8: #{tpu_custom_call.1} parent=1 // pred_region
      _
    $region9: #{tpu_custom_call.1} parent=1 // pred_fallthru
      _
    // Predicated region
    $region10: #{tpu_custom_call.1} parent=1 // pred_check
      _
    $region11: #{tpu_custom_call.1} parent=1 // pred_check_branch
      %15 = sbr.rel (0) target = $region13
    $region12: #{tpu_custom_call.1} parent=1 // pred_region
      _
    $region13: #{tpu_custom_call.1} parent=1 // pred_fallthru
      _
    // Predicated region
    $region14: #{tpu_custom_call.1} parent=1 // pred_check
      _
    $region15: #{tpu_custom_call.1} parent=1 // pred_check_branch
      %17 = sbr.rel (0) target = $region17
    $region16: #{tpu_custom_call.1} parent=1 // pred_region
      _
    $region17: #{tpu_custom_call.1} parent=1 // pred_fallthru
      _
    %v19 = vld [vmem:[%s0] sm:$0xf]
    %v20 = vld [vmem:[%s1] sm:$0xf]
    %v21 = vld [vmem:[%s1 + $0x4] sm:$0xf]
    %v22 = vld [vmem:[%s1 + $0x8] sm:$0xf]
    %v23 = vld [vmem:[%s1 + $0xc] sm:$0xf]
    %v24 = vld [vmem:[%s2] sm:$0x1]
    %v26 = vlaneseq
    %v27 = vshrl.u32 %v26, 7
    %v28 = vsub.s32 0, %v27
    %v29 = vrot.slane %v24, %v28
    %v35 = vunpack.c.l.b16 %v20
    %v36 = vunpack.c.l.b16 %v21
    %v37 = vunpack.c.l.b16 %v22
    %v38 = vunpack.c.l.b16 %v23
    %v39 = vpack.c.b16 %v36, %v35
    %v40 = vpack.c.b16 %v38, %v37
    %vm43 = vcmask 261120
    %v45 = vsel %vm43, %v19, 0
    %47 = vmatprep.subr.bf16.mxu0 0
    %48 = vmatpush1.bf16.msra.mxu0 %v39
    %49 = vmatprep.subr.bf16.mxu0 0
    %50 = vmatpush1.bf16.msra.mxu0 %v40
    %51 = vmatprep.subr.bf16.mxu0 0
    %52 = vmatpush1.bf16.msra.mxu0 0
    %53 = vmatprep.subr.bf16.mxu0 0
    %54 = vmatpush1.bf16.msra.mxu0 0
    %55 = vmatprep.subr.bf16.mxu0 0
    %56 = vmatpush1.bf16.msra.mxu0 0
    %57 = vmatprep.subr.bf16.mxu0 0
    %58 = vmatpush1.bf16.msra.mxu0 0
    %59 = vmatprep.subr.bf16.mxu0 0
    %60 = vmatpush1.bf16.msra.mxu0 0
    %61 = vmatprep.subr.bf16.mxu0 0
    %62 = vmatpush1.bf16.msra.mxu0 0
    %63 = vmatprep.subr.bf16.mxu0 0
    %64 = vmatpush1.bf16.msra.mxu0 0
    %65 = vmatprep.subr.bf16.mxu0 0
    %66 = vmatpush1.bf16.msra.mxu0 0
    %67 = vmatprep.subr.bf16.mxu0 0
    %68 = vmatpush1.bf16.msra.mxu0 0
    %69 = vmatprep.subr.bf16.mxu0 0
    %70 = vmatpush1.bf16.msra.mxu0 0
    %71 = vmatprep.subr.bf16.mxu0 0
    %72 = vmatpush1.bf16.msra.mxu0 0
    %73 = vmatprep.subr.bf16.mxu0 0
    %74 = vmatpush1.bf16.msra.mxu0 0
    %75 = vmatprep.subr.bf16.mxu0 0
    %76 = vmatpush1.bf16.msra.mxu0 0
    %77 = vmatprep.subr.bf16.mxu0 0
    %78 = vmatpush1.bf16.msra.mxu0 0
    %79 = vmatprep.mubr.bf16.mxu0 0
    %80 = vmatmul.mubr.bf16.gmra.mrb[0].mxu0 %v45
    %v81 = vpop.f32.mrb[0].mxu0
    %v82 = vadd.f32 %v29, %v81
    %v83 = vpop.f32.mrb[0].mxu0
    %v84 = vpop.f32.mrb[0].mxu0
    %v85 = vpop.f32.mrb[0].mxu0
    %86 = vdwg.mxu0
    %v87 = vmax.f32 %v82, 0.0
    %v88 = vand.u32 2147483647, %v82
    %v89 = vsub.f32 0.0, %v88
    %v90 = vmul.f32 %v89, 1.442695
    %v91 = vpow.pop %v90
    %v92 = vadd.f32 %v91, 1.0
    %v93 = vlog2.pop %v92
    %v94 = vmul.f32 %v93, 0.6931472
    %v95 = vmul.f32 -0.5, %v91
    %v96 = vadd.f32 %v95, 1.0
    %v97 = vmul.f32 %v96, %v91
    %v98 = vand.u32 2147483647, %v91
    %vm99 = vcmp.lt.f32.partialorder %v98, 0.0004427343
    %v100 = vsel %vm99, %v97, %v94
    %v101 = vadd.f32 %v87, %v100
    %v102 = vld [vmem:[%s3] sm:$0xff]
    %104 = vrot.lane.b32.xlu0 %v101, 120
    %v105 = vpop.permute.xlu0 %104
    %v107 = vmul.f32 %v102, %v105
    %v108 = vadd.f32 %v82, %v107
    %vm109 = vcmask 64512
    %110 = vst.msk [vmem:[#allocation2] sm:$0xff] %vm109, %v108
    // Predicated region
    $region18: #{tpu_custom_call.1} parent=1 // pred_check
      _
    $region19: #{tpu_custom_call.1} parent=1 // pred_check_branch
      %112 = sbr.rel (0) target = $region21
    $region20: #{tpu_custom_call.1} parent=1 // pred_region
      %s114 = ssub.s32 128, 128
      %115 = vsyncadd [#allocation3], %s114
      %s117 = sshll.u32 [#allocation2], 4
      %s118 = int_to_ptr.vmem [resolvable:$true] %s117
      %120 = dma.vmem_to_hbm [thread:$0]  %s118, 128, %s4, [#allocation3]
    $region21: #{tpu_custom_call.1} parent=1 // pred_fallthru
      _
    // Predicated region
    $region22: #{tpu_custom_call.1} parent=1 // pred_check
      _
    $region23: #{tpu_custom_call.1} parent=1 // pred_check_branch
      %122 = sbr.rel (0) target = $region25
    $region24: #{tpu_custom_call.1} parent=1 // pred_region
      %123 = dma.done [#allocation3], 128
    $region25: #{tpu_custom_call.1} parent=1 // pred_fallthru
      _
    %124 = vsyncpa [#allocation3], 1

</llo_original>
